<compile_context>
chip_gen: v7x
topology: tpu7x:2x2x1
jax: 0.10.0
libtpu: 0.0.40
codegen_flags: <defaults>
</compile_context>

<pallas_src>
import functools

import jax
import jax.numpy as jnp
from jax.experimental import pallas as pl
from jax.experimental.pallas import tpu as pltpu


def _round_up(x, m):
    return ((x + m - 1) // m) * m


def mlp_kernel(x_ref, w1_ref, b1_ref, w2_ref, b2_ref, o_ref):
    # Layer 1: h = sigmoid(x @ w1 + b1)      (w1 already (in, hidden) — MXU-native)
    x = x_ref[...]                                                  # (TB, in_p)
    h = jnp.dot(x, w1_ref[...], preferred_element_type=jnp.float32)
    h = jax.nn.sigmoid(h + b1_ref[...])                             # f32 epilogue (EUP)
    # Layer 2: y = sigmoid(h @ w2 + b2)      (w2 already (hidden, out))
    w2 = w2_ref[...]
    y = jnp.dot(h.astype(w2.dtype), w2, preferred_element_type=jnp.float32)
    y = jax.nn.sigmoid(y + b2_ref[...])                             # f32 epilogue
    o_ref[...] = y.astype(o_ref.dtype)


@functools.partial(jax.jit, static_argnames=("block_batch", "matmul_dtype"))
def mlp_forward(x, w1, b1, w2, b2, *, block_batch=256, matmul_dtype=None):
    """2-layer MLP forward, PyTorch nn.Linear convention: w is (out, in), y = x @ w.T + b.

    block_batch: rows of x per grid step.  Sized so (TB, in_p) + (TB, out_p) f32
                 activation tiles (double-buffered) plus the VMEM-resident weights
                 stay far inside 64 MiB (v7x) / 128 MiB (v5e/v6e).
    matmul_dtype: optional dtype (e.g. jnp.bfloat16) for the MXU operands on
                 v6e/v7x; bias add + sigmoid + accumulation stay f32.
    """
    orig_dtype = x.dtype
    batch, in_size = x.shape
    hidden_size = w1.shape[0]
    out_size = w2.shape[0]

    LANE = 128
    SUBLANE = 8
    in_p = _round_up(in_size, LANE)
    hid_p = _round_up(hidden_size, LANE)
    out_p = _round_up(out_size, LANE)

    # Batch tile: multiple of 8 (sublane), capped at block_batch.
    tb = min(_round_up(block_batch, SUBLANE), _round_up(batch, SUBLANE))
    batch_p = _round_up(batch, tb)

    # Pre-transpose weights to MXU-native layout; zero-pad to lane-dense shapes.
    w1t = jnp.pad(w1.T.astype(jnp.float32),
                  ((0, in_p - in_size), (0, hid_p - hidden_size)))
    w2t = jnp.pad(w2.T.astype(jnp.float32),
                  ((0, hid_p - hidden_size), (0, out_p - out_size)))
    b1p = jnp.pad(b1.astype(jnp.float32).reshape(1, -1),
                  ((0, 0), (0, hid_p - hidden_size)))
    b2p = jnp.pad(b2.astype(jnp.float32).reshape(1, -1),
                  ((0, 0), (0, out_p - out_size)))
    xp = jnp.pad(x.astype(jnp.float32),
                 ((0, batch_p - batch), (0, in_p - in_size)))

    if matmul_dtype is not None:
        xp = xp.astype(matmul_dtype)
        w1t = w1t.astype(matmul_dtype)
        w2t = w2t.astype(matmul_dtype)
        # Biases intentionally stay f32 (f32 epilogue on all generations).

    flops = 2 * batch_p * in_p * hid_p + 2 * batch_p * hid_p * out_p
    bytes_accessed = (xp.size * xp.dtype.itemsize
                      + w1t.size * w1t.dtype.itemsize
                      + w2t.size * w2t.dtype.itemsize
                      + b1p.size * 4 + b2p.size * 4
                      + batch_p * out_p * jnp.dtype(orig_dtype).itemsize)

    grid = (batch_p // tb,)
    out_padded = pl.pallas_call(
        mlp_kernel,
        out_shape=jax.ShapeDtypeStruct((batch_p, out_p), orig_dtype),
        grid_spec=pl.GridSpec(
            grid=grid,
            in_specs=[
                # Activations: streamed (double-buffered) over the batch grid axis.
                pl.BlockSpec((tb, in_p), lambda i: (i, 0)),
                # Weights / biases: constant index_map -> VMEM-resident across steps.
                pl.BlockSpec((in_p, hid_p), lambda i: (0, 0)),
                pl.BlockSpec((1, hid_p), lambda i: (0, 0)),
                pl.BlockSpec((hid_p, out_p), lambda i: (0, 0)),
                pl.BlockSpec((1, out_p), lambda i: (0, 0)),
            ],
            out_specs=pl.BlockSpec((tb, out_p), lambda i: (i, 0)),
        ),
        compiler_params=pltpu.CompilerParams(
            # Each batch tile is independent -> shard across both TCs on v7x.
            dimension_semantics=("parallel",),
        ),
        cost_estimate=pl.CostEstimate(
            flops=flops, transcendentals=batch_p * (hid_p + out_p),
            bytes_accessed=bytes_accessed),
    )(xp, w1t, b1p, w2t, b2p)

    # Strip batch / lane padding.
    return out_padded[:batch, :out_size]


def init_params(key, in_size, hidden_size, out_size):
    # Deterministic init mimicking PyTorch nn.Linear default (uniform +/- 1/sqrt(fan_in)).
    k1, k2, k3, k4 = jax.random.split(key, 4)
    bound1 = 1.0 / (in_size ** 0.5)
    bound2 = 1.0 / (hidden_size ** 0.5)
    w1 = jax.random.uniform(k1, (hidden_size, in_size), jnp.float32, -bound1, bound1)
    b1 = jax.random.uniform(k2, (hidden_size,), jnp.float32, -bound1, bound1)
    w2 = jax.random.uniform(k3, (out_size, hidden_size), jnp.float32, -bound2, bound2)
    b2 = jax.random.uniform(k4, (out_size,), jnp.float32, -bound2, bound2)
    return w1, b1, w2, b2


if __name__ == "__main__":
    in_size, hidden_size, out_size = 16, 32, 8
    batch = 8

    key = jax.random.PRNGKey(0)
    kx, kp = jax.random.split(key)
    x = jax.random.normal(kx, (batch, in_size), dtype=jnp.float32)
    w1, b1, w2, b2 = init_params(kp, in_size, hidden_size, out_size)

    # Pure-JAX reference of the same forward semantics.
    ref = jax.nn.sigmoid(jax.nn.sigmoid(x @ w1.T + b1) @ w2.T + b2)

    # f32 MXU path (matches reference to tight tolerance).
    out_f32 = jax.block_until_ready(mlp_forward(x, w1, b1, w2, b2))
    assert out_f32.shape == (batch, out_size)
    assert jnp.allclose(out_f32, ref, atol=1e-5, rtol=1e-5)

    # bf16 MXU-operand path (recommended on v6e/v7x); f32 accumulate + epilogue.
    out_bf16 = jax.block_until_ready(
        mlp_forward(x, w1, b1, w2, b2, matmul_dtype=jnp.bfloat16))
    assert out_bf16.shape == (batch, out_size)
    assert jnp.allclose(out_bf16, ref, atol=2e-2, rtol=2e-2)

    print("KERNEL_OK")
</pallas_src>

<mosaic_0001>
module attributes {stable_mosaic.version = 11 : i64} {
  func.func @mlp_kernel(%arg0: i32, %arg1: memref<8x128xf32, #tpu.memory_space<vmem>>, %arg2: memref<128x128xf32, #tpu.memory_space<vmem>>, %arg3: memref<1x128xf32, #tpu.memory_space<vmem>>, %arg4: memref<128x128xf32, #tpu.memory_space<vmem>>, %arg5: memref<1x128xf32, #tpu.memory_space<vmem>>, %arg6: memref<8x128xf32, #tpu.memory_space<vmem>>) attributes {dimension_semantics = [#tpu.dimension_semantics<parallel>], iteration_bounds = array<i64: 1>, scalar_prefetch = 0 : i64, scratch_operands = 0 : i64, tpu.core_type = #tpu.core_type<tc>, window_params = [{transform_indices = @transform_0, window_bounds = array<i64: 8, 128>}, {pipeline_mode = #tpu.pipeline_mode<synchronous>, transform_indices = @transform_1, window_bounds = array<i64: 128, 128>}, {pipeline_mode = #tpu.pipeline_mode<synchronous>, transform_indices = @transform_2, window_bounds = array<i64: 1, 128>}, {pipeline_mode = #tpu.pipeline_mode<synchronous>, transform_indices = @transform_3, window_bounds = array<i64: 128, 128>}, {pipeline_mode = #tpu.pipeline_mode<synchronous>, transform_indices = @transform_4, window_bounds = array<i64: 1, 128>}, {transform_indices = @transform_5, window_bounds = array<i64: 8, 128>}]} {
    %c0 = arith.constant 0 : index
    %c0_0 = arith.constant 0 : index
    %0 = vector.load %arg1[%c0, %c0_0] : memref<8x128xf32, #tpu.memory_space<vmem>>, vector<8x128xf32>
    %c0_1 = arith.constant 0 : index
    %c0_2 = arith.constant 0 : index
    %1 = vector.load %arg2[%c0_1, %c0_2] : memref<128x128xf32, #tpu.memory_space<vmem>>, vector<128x128xf32>
    %cst = arith.constant dense<0.000000e+00> : vector<8x128xf32>
    %2 = tpu.matmul %0, %1, %cst {dimension_numbers = #tpu.dot_dimension_numbers<[1], [0], [0], [1], [0, 0, 1, 1], [], []>} : vector<8x128xf32>, vector<128x128xf32>, vector<8x128xf32> -> vector<8x128xf32>
    %c0_3 = arith.constant 0 : index
    %c0_4 = arith.constant 0 : index
    %3 = vector.load %arg3[%c0_3, %c0_4] : memref<1x128xf32, #tpu.memory_space<vmem>>, vector<1x128xf32>
    %4 = vector.broadcast %3 : vector<1x128xf32> to vector<8x128xf32>
    %5 = arith.addf %2, %4 : vector<8x128xf32>
    %6 = arith.negf %5 : vector<8x128xf32>
    %7 = math.exp %6 : vector<8x128xf32>
    %cst_5 = arith.constant 1.000000e+00 : f32
    %8 = vector.broadcast %cst_5 : f32 to vector<8x128xf32>
    %9 = arith.addf %8, %7 : vector<8x128xf32>
    %10 = arith.divf %8, %9 : vector<8x128xf32>
    %c0_6 = arith.constant 0 : index
    %c0_7 = arith.constant 0 : index
    %11 = vector.load %arg4[%c0_6, %c0_7] : memref<128x128xf32, #tpu.memory_space<vmem>>, vector<128x128xf32>
    %cst_8 = arith.constant dense<0.000000e+00> : vector<8x128xf32>
    %12 = tpu.matmul %10, %11, %cst_8 {dimension_numbers = #tpu.dot_dimension_numbers<[1], [0], [0], [1], [0, 0, 1, 1], [], []>} : vector<8x128xf32>, vector<128x128xf32>, vector<8x128xf32> -> vector<8x128xf32>
    %c0_9 = arith.constant 0 : index
    %c0_10 = arith.constant 0 : index
    %13 = vector.load %arg5[%c0_9, %c0_10] : memref<1x128xf32, #tpu.memory_space<vmem>>, vector<1x128xf32>
    %14 = vector.broadcast %13 : vector<1x128xf32> to vector<8x128xf32>
    %15 = arith.addf %12, %14 : vector<8x128xf32>
    %16 = arith.negf %15 : vector<8x128xf32>
    %17 = math.exp %16 : vector<8x128xf32>
    %cst_11 = arith.constant 1.000000e+00 : f32
    %18 = vector.broadcast %cst_11 : f32 to vector<8x128xf32>
    %19 = arith.addf %18, %17 : vector<8x128xf32>
    %20 = arith.divf %18, %19 : vector<8x128xf32>
    %c0_12 = arith.constant 0 : index
    %c0_13 = arith.constant 0 : index
    %21 = vector.load %arg6[%c0_12, %c0_13] : memref<8x128xf32, #tpu.memory_space<vmem>>, vector<8x128xf32>
    tpu.vector_store %arg6[%c0_12, %c0_13], %20 {strides = array<i32>} : memref<8x128xf32, #tpu.memory_space<vmem>>, vector<8x128xf32>,
    return
  }
  func.func @transform_0(%arg0: i32) -> (i32, i32) {
    %c0_i32 = arith.constant 0 : i32
    %c0_i32_0 = arith.constant 0 : i32
    return %arg0, %c0_i32 : i32, i32
  }
  func.func @transform_1(%arg0: i32) -> (i32, i32) {
    %c0_i32 = arith.constant 0 : i32
    %c0_i32_0 = arith.constant 0 : i32
    %c0_i32_1 = arith.constant 0 : i32
    return %c0_i32, %c0_i32_0 : i32, i32
  }
  func.func @transform_2(%arg0: i32) -> (i32, i32) {
    %c0_i32 = arith.constant 0 : i32
    %c0_i32_0 = arith.constant 0 : i32
    %c0_i32_1 = arith.constant 0 : i32
    return %c0_i32, %c0_i32_0 : i32, i32
  }
  func.func @transform_3(%arg0: i32) -> (i32, i32) {
    %c0_i32 = arith.constant 0 : i32
    %c0_i32_0 = arith.constant 0 : i32
    %c0_i32_1 = arith.constant 0 : i32
    return %c0_i32, %c0_i32_0 : i32, i32
  }
  func.func @transform_4(%arg0: i32) -> (i32, i32) {
    %c0_i32 = arith.constant 0 : i32
    %c0_i32_0 = arith.constant 0 : i32
    %c0_i32_1 = arith.constant 0 : i32
    return %c0_i32, %c0_i32_0 : i32, i32
  }
  func.func @transform_5(%arg0: i32) -> (i32, i32) {
    %c0_i32 = arith.constant 0 : i32
    %c0_i32_0 = arith.constant 0 : i32
    return %arg0, %c0_i32 : i32, i32
  }
}

</mosaic_0001>

<llo_original>
// kernel: mlp_forward.1
$region0: #{mlp_forward.1}
  #allocation0 [shape = 'u32[]', space=smem, size = 0x4, offset = 0x4, fixed_abs, tag = 'smem constant byte address 0x4 - core index']
  #allocation1 [shape = 'u32[144,128]{1,0:T(1,128)}', space=vmem, size = 0x12000, scoped, tag = 'internal scratch']
  %s0 = inlined_call_operand.vmem [shape: f32[8,128], index: 0, kind: input, shape index: {}]
  %s1 = inlined_call_operand.vmem [shape: f32[128,128], index: 1, kind: input, shape index: {}]
  %s2 = inlined_call_operand.vmem [shape: f32[1,128], index: 2, kind: input, shape index: {}]
  %s3 = inlined_call_operand.vmem [shape: f32[128,128], index: 3, kind: input, shape index: {}]
  %s4 = inlined_call_operand.vmem [shape: f32[1,128], index: 4, kind: input, shape index: {}]
  %s5 = inlined_call_operand.hbm [shape: f32[8,128], index: 5, kind: output, shape index: {}]
  %s6 = sld [smem:[#allocation0]]
  $region30: #{mlp_forward.1} parent=0
    _
  %s8 = ssub.s32 1, %s6
  %s9 = scalar_select 0, %s8, %s6
  $region1: #{mlp_forward.1} parent=0
    #allocation2 [shape = 'u8[4096]{0}', space=vmem, size = 0x1000, scoped, tag = 'output window, operand 0, single buffered']
    #allocation3 [shape = 's32[1]{0}', space=sflag, size = 0x4, scoped, tag = 'scoped memory for mlp_forward.1']
    %10 = vsyncpa [#allocation3], 0
    // Predicated region
    $region2: #{mlp_forward.1} parent=1 // pred_check
      _
    $region3: #{mlp_forward.1} parent=1 // pred_check_branch
      %12 = sbr.rel (0) target = $region5
    $region4: #{mlp_forward.1} parent=1 // pred_region
      _
    $region5: #{mlp_forward.1} parent=1 // pred_fallthru
      _
    // Predicated region
    $region6: #{mlp_forward.1} parent=1 // pred_check
      _
    $region7: #{mlp_forward.1} parent=1 // pred_check_branch
      %14 = sbr.rel (0) target = $region9
    $region8: #{mlp_forward.1} parent=1 // pred_region
      _
    $region9: #{mlp_forward.1} parent=1 // pred_fallthru
      _
    // Predicated region
    $region10: #{mlp_forward.1} parent=1 // pred_check
      _
    $region11: #{mlp_forward.1} parent=1 // pred_check_branch
      %16 = sbr.rel (0) target = $region13
    $region12: #{mlp_forward.1} parent=1 // pred_region
      _
    $region13: #{mlp_forward.1} parent=1 // pred_fallthru
      _
    // Predicated region
    $region14: #{mlp_forward.1} parent=1 // pred_check
      _
    $region15: #{mlp_forward.1} parent=1 // pred_check_branch
      %18 = sbr.rel (0) target = $region17
    $region16: #{mlp_forward.1} parent=1 // pred_region
      _
    $region17: #{mlp_forward.1} parent=1 // pred_fallthru
      _
    // Predicated region
    $region18: #{mlp_forward.1} parent=1 // pred_check
      _
    $region19: #{mlp_forward.1} parent=1 // pred_check_branch
      %20 = sbr.rel (0) target = $region21
    $region20: #{mlp_forward.1} parent=1 // pred_region
      _
    $region21: #{mlp_forward.1} parent=1 // pred_fallthru
      _
    %v21 = vld [vmem:[%s0] sm:$0xff]
    %v22 = vld [vmem:[%s1] sm:$0xff]
    %v23 = vld [vmem:[%s1 + $0x8] sm:$0xff]
    %v24 = vld [vmem:[%s1 + $0x10] sm:$0xff]
    %v25 = vld [vmem:[%s1 + $0x18] sm:$0xff]
    %v26 = vld [vmem:[%s1 + $0x20] sm:$0xff]
    %v27 = vld [vmem:[%s1 + $0x28] sm:$0xff]
    %v28 = vld [vmem:[%s1 + $0x30] sm:$0xff]
    %v29 = vld [vmem:[%s1 + $0x38] sm:$0xff]
    %v30 = vld [vmem:[%s1 + $0x40] sm:$0xff]
    %v31 = vld [vmem:[%s1 + $0x48] sm:$0xff]
    %v32 = vld [vmem:[%s1 + $0x50] sm:$0xff]
    %v33 = vld [vmem:[%s1 + $0x58] sm:$0xff]
    %v34 = vld [vmem:[%s1 + $0x60] sm:$0xff]
    %v35 = vld [vmem:[%s1 + $0x68] sm:$0xff]
    %v36 = vld [vmem:[%s1 + $0x70] sm:$0xff]
    %v37 = vld [vmem:[%s1 + $0x78] sm:$0xff]
    %v38 = vld [vmem:[%s2] sm:$0x1]
    %v40 = vlaneseq
    %v41 = vshrl.u32 %v40, 7
    %v42 = vsub.s32 0, %v41
    %v43 = vrot.slane %v38, %v42
    %45 = vmatprep.subr.mxu0 0.0
    %46 = vmatpush1.msra.mxu0 %v22
    %47 = vmatprep.subr.mxu0 0.0
    %48 = vmatpush1.msra.mxu0 %v23
    %49 = vmatprep.subr.mxu0 0.0
    %50 = vmatpush1.msra.mxu0 %v24
    %51 = vmatprep.subr.mxu0 0.0
    %52 = vmatpush1.msra.mxu0 %v25
    %53 = vmatprep.subr.mxu0 0.0
    %54 = vmatpush1.msra.mxu0 %v26
    %55 = vmatprep.subr.mxu0 0.0
    %56 = vmatpush1.msra.mxu0 %v27
    %57 = vmatprep.subr.mxu0 0.0
    %58 = vmatpush1.msra.mxu0 %v28
    %59 = vmatprep.subr.mxu0 0.0
    %60 = vmatpush1.msra.mxu0 %v29
    %61 = vmatprep.subr.mxu0 0.0
    %62 = vmatpush1.msra.mxu0 %v30
    %63 = vmatprep.subr.mxu0 0.0
    %64 = vmatpush1.msra.mxu0 %v31
    %65 = vmatprep.subr.mxu0 0.0
    %66 = vmatpush1.msra.mxu0 %v32
    %67 = vmatprep.subr.mxu0 0.0
    %68 = vmatpush1.msra.mxu0 %v33
    %69 = vmatprep.subr.mxu0 0.0
    %70 = vmatpush1.msra.mxu0 %v34
    %71 = vmatprep.subr.mxu0 0.0
    %72 = vmatpush1.msra.mxu0 %v35
    %73 = vmatprep.subr.mxu0 0.0
    %74 = vmatpush1.msra.mxu0 %v36
    %75 = vmatprep.subr.mxu0 0.0
    %76 = vmatpush1.msra.mxu0 %v37
    %77 = vmatprep.subr.mxu0 0.0
    %78 = vmatpush1.msra.mxu0 0.0
    %79 = vmatprep.subr.mxu0 0.0
    %80 = vmatpush1.msra.mxu0 0.0
    %81 = vmatprep.subr.mxu0 0.0
    %82 = vmatpush1.msra.mxu0 0.0
    %83 = vmatprep.subr.mxu0 0.0
    %84 = vmatpush1.msra.mxu0 0.0
    %85 = vmatprep.subr.mxu0 0.0
    %86 = vmatpush1.msra.mxu0 0.0
    %87 = vmatprep.subr.mxu0 0.0
    %88 = vmatpush1.msra.mxu0 0.0
    %89 = vmatprep.subr.mxu0 0.0
    %90 = vmatpush1.msra.mxu0 0.0
    %91 = vmatprep.subr.mxu0 0.0
    %92 = vmatpush1.msra.mxu0 0.0
    %93 = vmatprep.subr.mxu0 0.0
    %94 = vmatpush1.msra.mxu0 0.0
    %95 = vmatprep.subr.mxu0 0.0
    %96 = vmatpush1.msra.mxu0 0.0
    %97 = vmatprep.subr.mxu0 0.0
    %98 = vmatpush1.msra.mxu0 0.0
    %99 = vmatprep.subr.mxu0 0.0
    %100 = vmatpush1.msra.mxu0 0.0
    %101 = vmatprep.subr.mxu0 0.0
    %102 = vmatpush1.msra.mxu0 0.0
    %103 = vmatprep.subr.mxu0 0.0
    %104 = vmatpush1.msra.mxu0 0.0
    %105 = vmatprep.subr.mxu0 0.0
    %106 = vmatpush1.msra.mxu0 0.0
    %107 = vmatprep.subr.mxu0 0.0
    %108 = vmatpush1.msra.mxu0 0.0
    %109 = vmatprep.mubr.f32.mxu0 0.0
    %110 = vmatmul.mubr.f32.gmra.mrb[0].mxu0 %v21
    %v111 = vpop.f32.mrb[0].mxu0
    %v112 = vadd.f32 %v43, %v111
    %v113 = vpop.f32.mrb[0].mxu0
    %114 = vdwg.mxu0
    %v115 = vxor.u32 %v112, 2147483648
    %v116 = vmul.f32 %v115, 1.442695
    %v117 = vpow.pop %v116
    %v118 = vadd.f32 %v117, 1.0
    %v119 = vrcp.pop %v118
    %v120 = vmul.f32 1.0, %v119
    %v121 = vld [vmem:[%s3] sm:$0xff]
    %v122 = vld [vmem:[%s3 + $0x8] sm:$0xff]
    %v123 = vld [vmem:[%s3 + $0x10] sm:$0xff]
    %v124 = vld [vmem:[%s3 + $0x18] sm:$0xff]
    %v125 = vld [vmem:[%s3 + $0x20] sm:$0xff]
    %v126 = vld [vmem:[%s3 + $0x28] sm:$0xff]
    %v127 = vld [vmem:[%s3 + $0x30] sm:$0xff]
    %v128 = vld [vmem:[%s3 + $0x38] sm:$0xff]
    %v129 = vld [vmem:[%s3 + $0x40] sm:$0xff]
    %v130 = vld [vmem:[%s3 + $0x48] sm:$0xff]
    %v131 = vld [vmem:[%s3 + $0x50] sm:$0xff]
    %v132 = vld [vmem:[%s3 + $0x58] sm:$0xff]
    %v133 = vld [vmem:[%s3 + $0x60] sm:$0xff]
    %v134 = vld [vmem:[%s3 + $0x68] sm:$0xff]
    %v135 = vld [vmem:[%s3 + $0x70] sm:$0xff]
    %v136 = vld [vmem:[%s3 + $0x78] sm:$0xff]
    %v137 = vld [vmem:[%s4] sm:$0x1]
    %v139 = vlaneseq
    %v140 = vshrl.u32 %v139, 7
    %v141 = vsub.s32 0, %v140
    %v142 = vrot.slane %v137, %v141
    %144 = vmatprep.subr.mxu0 0.0
    %145 = vmatpush1.msra.mxu0 %v121
    %146 = vmatprep.subr.mxu0 0.0
    %147 = vmatpush1.msra.mxu0 %v122
    %148 = vmatprep.subr.mxu0 0.0
    %149 = vmatpush1.msra.mxu0 %v123
    %150 = vmatprep.subr.mxu0 0.0
    %151 = vmatpush1.msra.mxu0 %v124
    %152 = vmatprep.subr.mxu0 0.0
    %153 = vmatpush1.msra.mxu0 %v125
    %154 = vmatprep.subr.mxu0 0.0
    %155 = vmatpush1.msra.mxu0 %v126
    %156 = vmatprep.subr.mxu0 0.0
    %157 = vmatpush1.msra.mxu0 %v127
    %158 = vmatprep.subr.mxu0 0.0
    %159 = vmatpush1.msra.mxu0 %v128
    %160 = vmatprep.subr.mxu0 0.0
    %161 = vmatpush1.msra.mxu0 %v129
    %162 = vmatprep.subr.mxu0 0.0
    %163 = vmatpush1.msra.mxu0 %v130
    %164 = vmatprep.subr.mxu0 0.0
    %165 = vmatpush1.msra.mxu0 %v131
    %166 = vmatprep.subr.mxu0 0.0
    %167 = vmatpush1.msra.mxu0 %v132
    %168 = vmatprep.subr.mxu0 0.0
    %169 = vmatpush1.msra.mxu0 %v133
    %170 = vmatprep.subr.mxu0 0.0
    %171 = vmatpush1.msra.mxu0 %v134
    %172 = vmatprep.subr.mxu0 0.0
    %173 = vmatpush1.msra.mxu0 %v135
    %174 = vmatprep.subr.mxu0 0.0
    %175 = vmatpush1.msra.mxu0 %v136
    %176 = vmatprep.subr.mxu0 0.0
    %177 = vmatpush1.msra.mxu0 0.0
    %178 = vmatprep.subr.mxu0 0.0
    %179 = vmatpush1.msra.mxu0 0.0
    %180 = vmatprep.subr.mxu0 0.0
    %181 = vmatpush1.msra.mxu0 0.0
    %182 = vmatprep.subr.mxu0 0.0
    %183 = vmatpush1.msra.mxu0 0.0
    %184 = vmatprep.subr.mxu0 0.0
    %185 = vmatpush1.msra.mxu0 0.0
    %186 = vmatprep.subr.mxu0 0.0
    %187 = vmatpush1.msra.mxu0 0.0
    %188 = vmatprep.subr.mxu0 0.0
    %189 = vmatpush1.msra.mxu0 0.0
    %190 = vmatprep.subr.mxu0 0.0
    %191 = vmatpush1.msra.mxu0 0.0
    %192 = vmatprep.subr.mxu0 0.0
    %193 = vmatpush1.msra.mxu0 0.0
    %194 = vmatprep.subr.mxu0 0.0
    %195 = vmatpush1.msra.mxu0 0.0
    %196 = vmatprep.subr.mxu0 0.0
    %197 = vmatpush1.msra.mxu0 0.0
    %198 = vmatprep.subr.mxu0 0.0
    %199 = vmatpush1.msra.mxu0 0.0
    %200 = vmatprep.subr.mxu0 0.0
    %201 = vmatpush1.msra.mxu0 0.0
    %202 = vmatprep.subr.mxu0 0.0
    %203 = vmatpush1.msra.mxu0 0.0
    %204 = vmatprep.subr.mxu0 0.0
    %205 = vmatpush1.msra.mxu0 0.0
    %206 = vmatprep.subr.mxu0 0.0
    %207 = vmatpush1.msra.mxu0 0.0
    %208 = vmatprep.mubr.f32.mxu0 0.0
    %209 = vmatmul.mubr.f32.gmra.mrb[0].mxu0 %v120
    %v210 = vpop.f32.mrb[0].mxu0
    %v211 = vadd.f32 %v142, %v210
    %v212 = vpop.f32.mrb[0].mxu0
    %213 = vdwg.mxu0
    %v214 = vxor.u32 %v211, 2147483648
    %v215 = vmul.f32 %v214, 1.442695
    %v216 = vpow.pop %v215
    %v217 = vadd.f32 %v216, 1.0
    %v218 = vrcp.pop %v217
    %v219 = vmul.f32 1.0, %v218
    %220 = vst [vmem:[#allocation2] sm:$0xff] %v219
    // Predicated region
    $region22: #{mlp_forward.1} parent=1 // pred_check
      _
    $region23: #{mlp_forward.1} parent=1 // pred_check_branch
      %222 = sbr.rel (0) target = $region25
    $region24: #{mlp_forward.1} parent=1 // pred_region
      %s224 = ssub.s32 128, 128
      %225 = vsyncadd [#allocation3], %s224
      %s227 = sshll.u32 [#allocation2], 4
      %s228 = int_to_ptr.vmem [resolvable:$true] %s227
      %230 = dma.vmem_to_hbm [thread:$0]  %s228, 128, %s5, [#allocation3]
    $region25: #{mlp_forward.1} parent=1 // pred_fallthru
      _
    // Predicated region
    $region26: #{mlp_forward.1} parent=1 // pred_check
      _
    $region27: #{mlp_forward.1} parent=1 // pred_check_branch
      %232 = sbr.rel (0) target = $region29
    $region28: #{mlp_forward.1} parent=1 // pred_region
      %233 = dma.done [#allocation3], 128
    $region29: #{mlp_forward.1} parent=1 // pred_fallthru
      _
    %234 = vsyncpa [#allocation3], 1

</llo_original>
